<compile_context>
chip_gen: v6e
topology: v6e:2x2x1
jax: 0.10.0
libtpu: 0.0.40
codegen_flags: <defaults>
</compile_context>

<pallas_src>
import functools
import math

import jax
import jax.numpy as jnp
from jax.experimental import pallas as pl
from jax.experimental.pallas import tpu as pltpu


_LANE = 128
# Large finite negative for masked scores (avoids -inf - -inf = NaN paths).
_MASK_VALUE = -0.7 * float(jnp.finfo(jnp.float32).max)


# ----------------------------- small helpers -----------------------------
def _round_up(x, m):
    return ((x + m - 1) // m) * m


def _sublane(dtype):
    """Sublane tile for a dtype: 8 for 4-byte, 16 for 2-byte, 32 for 1-byte."""
    return {4: 8, 2: 16, 1: 32}.get(jnp.dtype(dtype).itemsize, 8)


def _vmem_limit(est_bytes):
    """Scoped-VMEM limit: raise above default when needed, stay under v7x's 64 MiB."""
    return int(min(max(est_bytes, 32 * 1024 * 1024), 60 * 1024 * 1024))


# ----------------------------- Linear projection kernels -----------------------------
def _linear_bias_kernel(x_ref, w_ref, b_ref, o_ref, acc_ref):
    # x: (tm, tk), w: (tk, tn), b: (1, tn), acc: (tm, tn) f32.
    @pl.when(pl.program_id(2) == 0)
    def _init():
        # Fold the bias into the accumulator init (saves a separate VPU add pass).
        acc_ref[...] = jnp.broadcast_to(b_ref[...].astype(jnp.float32), acc_ref.shape)

    acc_ref[...] += jnp.dot(x_ref[...], w_ref[...], preferred_element_type=jnp.float32)

    @pl.when(pl.program_id(2) == pl.num_programs(2) - 1)
    def _store():
        o_ref[...] = acc_ref[...].astype(o_ref.dtype)


def _linear_nobias_kernel(x_ref, w_ref, o_ref, acc_ref):
    @pl.when(pl.program_id(2) == 0)
    def _init():
        acc_ref[...] = jnp.zeros_like(acc_ref)

    acc_ref[...] += jnp.dot(x_ref[...], w_ref[...], preferred_element_type=jnp.float32)

    @pl.when(pl.program_id(2) == pl.num_programs(2) - 1)
    def _store():
        o_ref[...] = acc_ref[...].astype(o_ref.dtype)


def linear_pallas(x, w_t, b=None, *, tm_target=512, tn_target=512, tk_target=512):
    """y = x @ w_t (+ b).  x: (T, Cin), w_t: (Cin, Cout), b: (Cout,) or None.

    Non-divisible shapes are zero-padded on the host (never an OOB block) and the
    padding is sliced off the result.  Zero-padded Cin columns/rows contribute 0.
    """
    T, Cin = x.shape
    Cout = w_t.shape[1]
    sub = _sublane(x.dtype)

    tm = T if T <= tm_target else _round_up(tm_target, sub)
    tn = Cout if Cout <= tn_target else _round_up(tn_target, _LANE)
    tk = Cin if Cin <= tk_target else _round_up(tk_target, _LANE)

    Tp = T if tm == T else _round_up(T, tm)
    Cop = Cout if tn == Cout else _round_up(Cout, tn)
    Cip = Cin if tk == Cin else _round_up(Cin, tk)

    if Tp != T or Cip != Cin:
        x = jnp.pad(x, ((0, Tp - T), (0, Cip - Cin)))
    if Cip != Cin or Cop != Cout:
        w_t = jnp.pad(w_t, ((0, Cip - Cin), (0, Cop - Cout)))
    if b is not None and Cop != Cout:
        b = jnp.pad(b, (0, Cop - Cout))

    grid = (Tp // tm, Cop // tn, Cip // tk)
    x_spec = pl.BlockSpec((tm, tk), lambda i, j, kk: (i, kk))
    w_spec = pl.BlockSpec((tk, tn), lambda i, j, kk: (kk, j))
    o_spec = pl.BlockSpec((tm, tn), lambda i, j, kk: (i, j))
    scratch = [pltpu.VMEM((tm, tn), jnp.float32)]

    isz = jnp.dtype(x.dtype).itemsize
    est = (2 * (tm * _round_up(tk, _LANE) * isz
                + tk * _round_up(tn, _LANE) * isz
                + tm * _round_up(tn, _LANE) * isz
                + (_round_up(tn, _LANE) * isz if b is not None else 0))
           + tm * _round_up(tn, _LANE) * 4
           + (1 << 20))
    cp = pltpu.CompilerParams(
        dimension_semantics=("parallel", "parallel", "arbitrary"),
        vmem_limit_bytes=_vmem_limit(est))

    if b is None:
        out = pl.pallas_call(
            _linear_nobias_kernel,
            out_shape=jax.ShapeDtypeStruct((Tp, Cop), x.dtype),
            grid=grid,
            in_specs=[x_spec, w_spec],
            out_specs=o_spec,
            scratch_shapes=scratch,
            compiler_params=cp,
        )(x, w_t)
    else:
        b2 = b.reshape(1, Cop)
        b_spec = pl.BlockSpec((1, tn), lambda i, j, kk: (0, j))
        out = pl.pallas_call(
            _linear_bias_kernel,
            out_shape=jax.ShapeDtypeStruct((Tp, Cop), x.dtype),
            grid=grid,
            in_specs=[x_spec, w_spec, b_spec],
            out_specs=o_spec,
            scratch_shapes=scratch,
            compiler_params=cp,
        )(x, w_t, b2)

    if Tp != T or Cop != Cout:
        out = out[:T, :Cout]
    return out


# ----------------------------- Attention kernel (flash-style, q + kv tiled) -----------------------------
def _mha_fwd_kernel(q_ref, k_ref, v_ref, o_ref, m_sc, l_sc, acc_sc,
                    *, num_heads, kv_len):
    # q: (1, tq, C) (already scaled; scale folded into the q projection),
    # k/v: (1, tkv, C).  Grid = (batch, q-tile, kv-tile); online softmax over kv.
    H = num_heads
    kj = pl.program_id(2)

    @pl.when(kj == 0)
    def _init():
        m_sc[...] = jnp.full_like(m_sc, _MASK_VALUE)
        l_sc[...] = jnp.zeros_like(l_sc)
        acc_sc[...] = jnp.zeros_like(acc_sc)

    q_all = q_ref[0]          # (tq, C)
    k_all = k_ref[0]          # (tkv, C)
    v_all = v_ref[0]          # (tkv, C)
    C = q_all.shape[1]
    tkv = k_all.shape[0]
    D = C // H

    # Mask host-padded KV rows (only the last tile can contain padding; the mask
    # is all-true elsewhere).  Padding is explicit zeros, so no NaN can leak in.
    if kv_len % tkv != 0:
        kv_pos = kj * tkv + jax.lax.broadcasted_iota(jnp.int32, (1, tkv), 1)
        pad_mask = kv_pos < kv_len
    else:
        pad_mask = None

    # TODO(synk): for head_dim >= 128 the heads should move onto a grid axis
    # (lane-aligned (1, tq, D) blocks); for small head_dim the per-head lane
    # slices below are the only layout that satisfies the (8,128) block rule.
    for h in range(H):
        lo = h * D
        qh = q_all[:, lo:lo + D]
        kh = k_all[:, lo:lo + D]
        vh = v_all[:, lo:lo + D]

        # "NT" score matmul — contract the last dims, no materialized k.T.
        s = jax.lax.dot_general(
            qh, kh, (((1,), (1,)), ((), ())),
            preferred_element_type=jnp.float32)          # (tq, tkv) f32
        if pad_mask is not None:
            s = jnp.where(pad_mask, s, _MASK_VALUE)

        m_prev = m_sc[h]                                  # (tq, 1)
        m_new = jnp.maximum(m_prev, jnp.max(s, axis=-1, keepdims=True))
        alpha = jnp.exp(m_prev - m_new)
        p = jnp.exp(s - m_new)                            # (tq, tkv) f32
        l_sc[h] = alpha * l_sc[h] + jnp.sum(p, axis=-1, keepdims=True)
        acc_sc[h] = alpha * acc_sc[h] + jnp.dot(
            p.astype(vh.dtype), vh, preferred_element_type=jnp.float32)
        m_sc[h] = m_new

    @pl.when(kj == pl.num_programs(2) - 1)
    def _finalize():
        # Direct per-head lane-slice stores — no H-way concatenate relayout.
        for h in range(H):
            lo = h * D
            inv_l = pl.reciprocal(l_sc[h], approx=False)  # exact; approx=True -> EUP, ~1e-3
            o_ref[0, :, lo:lo + D] = (acc_sc[h] * inv_l).astype(o_ref.dtype)


def attention_pallas(qp, kp, vp, num_heads, *, q_block=256, kv_block=256):
    """qp: (B, N, C), kp/vp: (B, M, C) -> (B, N, C); heads split inside the kernel."""
    B, N, C = qp.shape
    _, M, _ = kp.shape
    H = num_heads
    D = C // H
    sub = _sublane(qp.dtype)

    # Query tiling (pad N on the host; padded rows are sliced off afterwards).
    if N <= q_block:
        tq, Np = N, N
    else:
        tq = _round_up(min(q_block, N), sub)
        Np = _round_up(N, tq)
    # KV tiling (pad M on the host with zeros; padded columns masked in-kernel).
    if M <= kv_block:
        tkv, Mp = M, M
    else:
        tkv = _round_up(min(kv_block, M), sub)
        Mp = _round_up(M, tkv)

    if Np != N:
        qp = jnp.pad(qp, ((0, 0), (0, Np - N), (0, 0)))
    if Mp != M:
        kp = jnp.pad(kp, ((0, 0), (0, Mp - M), (0, 0)))
        vp = jnp.pad(vp, ((0, 0), (0, Mp - M), (0, 0)))

    grid = (B, Np // tq, Mp // tkv)

    # VMEM working-set estimate (double-buffered blocks + f32 scratch, lane-padded).
    isz = jnp.dtype(qp.dtype).itemsize
    c_pad = _round_up(C, _LANE)
    d_pad = _round_up(D, _LANE)
    est = (2 * (tq * c_pad * isz + 2 * tkv * c_pad * isz + tq * c_pad * isz)
           + 2 * H * tq * _LANE * 4 + H * tq * d_pad * 4
           + (2 << 20))

    kernel = functools.partial(_mha_fwd_kernel, num_heads=H, kv_len=M)
    out = pl.pallas_call(
        kernel,
        out_shape=jax.ShapeDtypeStruct((B, Np, C), qp.dtype),
        grid=grid,
        in_specs=[
            pl.BlockSpec((1, tq, C), lambda b, qi, kj: (b, qi, 0)),   # q resident across kv
            pl.BlockSpec((1, tkv, C), lambda b, qi, kj: (b, kj, 0)),
            pl.BlockSpec((1, tkv, C), lambda b, qi, kj: (b, kj, 0)),
        ],
        out_specs=pl.BlockSpec((1, tq, C), lambda b, qi, kj: (b, qi, 0)),
        scratch_shapes=[
            pltpu.VMEM((H, tq, 1), jnp.float32),   # running max
            pltpu.VMEM((H, tq, 1), jnp.float32),   # running denom
            pltpu.VMEM((H, tq, D), jnp.float32),   # running numerator
        ],
        compiler_params=pltpu.CompilerParams(
            dimension_semantics=("parallel", "parallel", "arbitrary"),
            vmem_limit_bytes=_vmem_limit(est)),
    )(qp, kp, vp)

    if Np != N:
        out = out[:, :N, :]
    return out


# ----------------------------- Full module forward -----------------------------
class MultiHeadAttentionPallas:
    def __init__(self, dim, num_heads=8, qkv_bias=False, qk_scale=None, key=None,
                 q_block=256, kv_block=256, param_dtype=jnp.float32):
        self.dim = dim
        self.num_heads = num_heads
        head_dim = dim // num_heads
        self.scale = qk_scale or head_dim ** (-0.5)
        self.q_block = q_block
        self.kv_block = kv_block
        self.param_dtype = param_dtype

        key = jax.random.PRNGKey(42) if key is None else key
        ks = jax.random.split(key, 8)
        lim = 1.0 / math.sqrt(dim)

        def init_w(k):
            return jax.random.uniform(k, (dim, dim), jnp.float32, -lim, lim)

        # PyTorch Linear: y = x @ W.T + b  (W: (out, in)).  Store transposed weights.
        self.q_w_t = init_w(ks[0]).T
        self.k_w_t = init_w(ks[1]).T
        self.v_w_t = init_w(ks[2]).T
        self.proj_w_t = init_w(ks[3]).T
        if qkv_bias:
            self.q_b = jax.random.uniform(ks[4], (dim,), jnp.float32, -lim, lim)
            self.k_b = jax.random.uniform(ks[5], (dim,), jnp.float32, -lim, lim)
            self.v_b = jax.random.uniform(ks[6], (dim,), jnp.float32, -lim, lim)
        else:
            self.q_b = self.k_b = self.v_b = None   # no zero-bias DMA / add
        self.proj_b = jax.random.uniform(ks[7], (dim,), jnp.float32, -lim, lim)

        # Kernel-side parameters: attention scale folded into the q projection and
        # a one-time cast to the compute dtype (bf16 on v6e/v7x hits the MXU fast path).
        pd = param_dtype
        self._q_w_t = (self.q_w_t * self.scale).astype(pd)
        self._q_b = None if self.q_b is None else (self.q_b * self.scale).astype(pd)
        self._k_w_t = self.k_w_t.astype(pd)
        self._k_b = None if self.k_b is None else self.k_b.astype(pd)
        self._v_w_t = self.v_w_t.astype(pd)
        self._v_b = None if self.v_b is None else self.v_b.astype(pd)
        self._proj_w_t = self.proj_w_t.astype(pd)
        self._proj_b = self.proj_b.astype(pd)

    def __call__(self, q, k, v):
        B, N, C = q.shape
        _, M, _ = k.shape
        pd = self.param_dtype

        q2 = q.reshape(B * N, C).astype(pd)
        k2 = k.reshape(B * M, C).astype(pd)
        v2 = v.reshape(B * M, C).astype(pd)

        # Projections (tiled Pallas matmuls on flattened tokens; reshape is free).
        qp = linear_pallas(q2, self._q_w_t, self._q_b).reshape(B, N, C)
        kp = linear_pallas(k2, self._k_w_t, self._k_b).reshape(B, M, C)
        vp = linear_pallas(v2, self._v_w_t, self._v_b).reshape(B, M, C)

        # Attention — consumes/produces (B, T, C) layout directly; no host transposes.
        x = attention_pallas(qp, kp, vp, self.num_heads,
                             q_block=self.q_block, kv_block=self.kv_block)

        # Output projection.  attn_drop / proj_drop are identity (p = 0.0).
        out = linear_pallas(x.reshape(B * N, C), self._proj_w_t, self._proj_b)
        return out.reshape(B, N, C)


# ----------------------------- Pure-JAX reference -----------------------------
def reference_forward(mod, q, k, v):
    B, N, C = q.shape
    _, M, _ = k.shape
    H, D = mod.num_heads, C // mod.num_heads

    def lin(x, w_t, b):
        y = x @ w_t
        return y if b is None else y + b

    qp = lin(q, mod.q_w_t, mod.q_b)
    kp = lin(k, mod.k_w_t, mod.k_b)
    vp = lin(v, mod.v_w_t, mod.v_b)
    qh = qp.reshape(B, N, H, D).transpose(0, 2, 1, 3)
    kh = kp.reshape(B, M, H, D).transpose(0, 2, 1, 3)
    vh = vp.reshape(B, M, H, D).transpose(0, 2, 1, 3)
    attn = jnp.einsum("bhnd,bhmd->bhnm", qh, kh) * mod.scale
    attn = jax.nn.softmax(attn, axis=-1)
    x = jnp.einsum("bhnm,bhmd->bhnd", attn, vh).transpose(0, 2, 1, 3).reshape(B, N, C)
    return x @ mod.proj_w_t + mod.proj_b


if __name__ == "__main__":
    # dim=32, num_heads=8 -> head_dim=4.  N=24 with q_block=16 exercises the
    # query-tiling + host-padding path; M=24 with kv_block=16 exercises the
    # multi-step online softmax including the zero-padded, masked KV tail.
    B, N, M, C, H = 2, 24, 24, 32, 8

    key = jax.random.PRNGKey(0)
    kq, kk, kv_, kp = jax.random.split(key, 4)
    q = jax.random.normal(kq, (B, N, C), jnp.float32)
    k = jax.random.normal(kk, (B, M, C), jnp.float32)
    v = jax.random.normal(kv_, (B, M, C), jnp.float32)

    mod = MultiHeadAttentionPallas(dim=C, num_heads=H, qkv_bias=True, key=kp,
                                   q_block=16, kv_block=16)

    out = jax.block_until_ready(mod(q, k, v))
    ref = reference_forward(mod, q, k, v)

    assert out.shape == (B, N, C)
    max_err = float(jnp.max(jnp.abs(out - ref)))
    assert jnp.allclose(out, ref, atol=2e-4, rtol=2e-4), (
        f"mismatch vs reference (max abs err {max_err})")

    print("KERNEL_OK")
</pallas_src>

<mosaic_0001>
module attributes {stable_mosaic.version = 11 : i64} {
  func.func @_linear_bias_kernel(%arg0: i32, %arg1: i32, %arg2: i32, %arg3: memref<48x32xf32, #tpu.memory_space<vmem>>, %arg4: memref<32x32xf32, #tpu.memory_space<vmem>>, %arg5: memref<1x32xf32, #tpu.memory_space<vmem>>, %arg6: memref<48x32xf32, #tpu.memory_space<vmem>>, %arg7: memref<48x32xf32, #tpu.memory_space<vmem>>) attributes {dimension_semantics = [#tpu.dimension_semantics<parallel>, #tpu.dimension_semantics<parallel>, #tpu.dimension_semantics<arbitrary>], iteration_bounds = array<i64: 1, 1, 1>, scalar_prefetch = 0 : i64, scratch_operands = 1 : i64, tpu.core_type = #tpu.core_type<tc>, window_params = [{transform_indices = @transform_0, window_bounds = array<i64: 48, 32>}, {transform_indices = @transform_1, window_bounds = array<i64: 32, 32>}, {transform_indices = @transform_2, window_bounds = array<i64: 1, 32>}, {transform_indices = @transform_3, window_bounds = array<i64: 48, 32>}]} {
    %c0_i32 = arith.constant 0 : i32
    %0 = arith.cmpi eq, %arg2, %c0_i32 : i32
    %1 = arith.extui %0 : i1 to i32
    %c0_i32_0 = arith.constant 0 : i32
    %2 = arith.cmpi ne, %1, %c0_i32_0 : i32
    scf.if %2 {
      %c0_10 = arith.constant 0 : index
      %c0_11 = arith.constant 0 : index
      %12 = vector.load %arg5[%c0_10, %c0_11] : memref<1x32xf32, #tpu.memory_space<vmem>>, vector<1x32xf32>
      %13 = vector.shape_cast %12 : vector<1x32xf32> to vector<1x32xf32>
      %14 = vector.broadcast %13 : vector<1x32xf32> to vector<48x32xf32>
      %c0_12 = arith.constant 0 : index
      %c0_13 = arith.constant 0 : index
      %15 = vector.load %arg7[%c0_12, %c0_13] : memref<48x32xf32, #tpu.memory_space<vmem>>, vector<48x32xf32>
      tpu.vector_store %arg7[%c0_12, %c0_13], %14 {strides = array<i32>} : memref<48x32xf32, #tpu.memory_space<vmem>>, vector<48x32xf32>,
    } else {
    }
    %c0 = arith.constant 0 : index
    %c0_1 = arith.constant 0 : index
    %3 = vector.load %arg7[%c0, %c0_1] : memref<48x32xf32, #tpu.memory_space<vmem>>, vector<48x32xf32>
    %c0_2 = arith.constant 0 : index
    %c0_3 = arith.constant 0 : index
    %4 = vector.load %arg3[%c0_2, %c0_3] : memref<48x32xf32, #tpu.memory_space<vmem>>, vector<48x32xf32>
    %c0_4 = arith.constant 0 : index
    %c0_5 = arith.constant 0 : index
    %5 = vector.load %arg4[%c0_4, %c0_5] : memref<32x32xf32, #tpu.memory_space<vmem>>, vector<32x32xf32>
    %cst = arith.constant dense<0.000000e+00> : vector<48x32xf32>
    %6 = tpu.matmul %4, %5, %cst {dimension_numbers = #tpu.dot_dimension_numbers<[1], [0], [0], [1], [0, 0, 1, 1], [], []>} : vector<48x32xf32>, vector<32x32xf32>, vector<48x32xf32> -> vector<48x32xf32>
    %7 = arith.addf %3, %6 : vector<48x32xf32>
    %c0_6 = arith.constant 0 : index
    %c0_7 = arith.constant 0 : index
    %8 = vector.load %arg7[%c0_6, %c0_7] : memref<48x32xf32, #tpu.memory_space<vmem>>, vector<48x32xf32>
    tpu.vector_store %arg7[%c0_6, %c0_7], %7 {strides = array<i32>} : memref<48x32xf32, #tpu.memory_space<vmem>>, vector<48x32xf32>,
    %c0_i32_8 = arith.constant 0 : i32
    %9 = arith.cmpi eq, %arg2, %c0_i32_8 : i32
    %10 = arith.extui %9 : i1 to i32
    %c0_i32_9 = arith.constant 0 : i32
    %11 = arith.cmpi ne, %10, %c0_i32_9 : i32
    scf.if %11 {
      %c0_10 = arith.constant 0 : index
      %c0_11 = arith.constant 0 : index
      %12 = vector.load %arg7[%c0_10, %c0_11] : memref<48x32xf32, #tpu.memory_space<vmem>>, vector<48x32xf32>
      %c0_12 = arith.constant 0 : index
      %c0_13 = arith.constant 0 : index
      %13 = vector.load %arg6[%c0_12, %c0_13] : memref<48x32xf32, #tpu.memory_space<vmem>>, vector<48x32xf32>
      tpu.vector_store %arg6[%c0_12, %c0_13], %12 {strides = array<i32>} : memref<48x32xf32, #tpu.memory_space<vmem>>, vector<48x32xf32>,
    } else {
    }
    return
  }
  func.func @transform_0(%arg0: i32, %arg1: i32, %arg2: i32) -> (i32, i32) {
    %c0_i32 = arith.constant 0 : i32
    return %arg0, %arg2 : i32, i32
  }
  func.func @transform_1(%arg0: i32, %arg1: i32, %arg2: i32) -> (i32, i32) {
    %c0_i32 = arith.constant 0 : i32
    return %arg2, %arg1 : i32, i32
  }
  func.func @transform_2(%arg0: i32, %arg1: i32, %arg2: i32) -> (i32, i32) {
    %c0_i32 = arith.constant 0 : i32
    %c0_i32_0 = arith.constant 0 : i32
    return %c0_i32, %arg1 : i32, i32
  }
  func.func @transform_3(%arg0: i32, %arg1: i32, %arg2: i32) -> (i32, i32) {
    %c0_i32 = arith.constant 0 : i32
    return %arg0, %arg1 : i32, i32
  }
}

</mosaic_0001>

<llo_original>
// kernel: tpu_custom_call.1
$region0: #{tpu_custom_call.1}
  #allocation0 [shape = 'u32[]', space=smem, size = 0x4, offset = 0x4, fixed_abs, tag = 'smem constant byte address 0x4 - core index']
  #allocation1 [shape = 'u32[144,128]{1,0:T(1,128)}', space=vmem, size = 0x12000, scoped, tag = 'internal scratch']
  #allocation2 [shape = 'f32[48,32]{1,0:T(8,128)}', space=vmem, size = 0x6000, scoped, tag = 'scratch operand']
  %s0 = inlined_call_operand.vmem [shape: f32[48,32], index: 0, kind: input, shape index: {}]
  %s1 = inlined_call_operand.vmem [shape: f32[32,32], index: 1, kind: input, shape index: {}]
  %s2 = inlined_call_operand.vmem [shape: f32[1,32], index: 2, kind: input, shape index: {}]
  %s3 = inlined_call_operand.vmem [shape: f32[48,32], index: 3, kind: output, shape index: {}]
  %s4 = sld [smem:[#allocation0]]
  $region30: #{tpu_custom_call.1} parent=0
    _
  %s6 = ssub.s32 1, %s4
  %s7 = scalar_select 0, %s6, %s4
  // Predicated region
  $region2: #{tpu_custom_call.1} parent=0 // pred_check
    _
  $region3: #{tpu_custom_call.1} parent=0 // pred_check_branch
    %9 = sbr.rel (0) target = $region5
  $region4: #{tpu_custom_call.1} parent=0 // pred_region
    _
  $region5: #{tpu_custom_call.1} parent=0 // pred_fallthru
    _
  // Predicated region
  $region6: #{tpu_custom_call.1} parent=0 // pred_check
    _
  $region7: #{tpu_custom_call.1} parent=0 // pred_check_branch
    %11 = sbr.rel (0) target = $region9
  $region8: #{tpu_custom_call.1} parent=0 // pred_region
    _
  $region9: #{tpu_custom_call.1} parent=0 // pred_fallthru
    _
  // Predicated region
  $region10: #{tpu_custom_call.1} parent=0 // pred_check
    _
  $region11: #{tpu_custom_call.1} parent=0 // pred_check_branch
    %13 = sbr.rel (0) target = $region13
  $region12: #{tpu_custom_call.1} parent=0 // pred_region
    _
  $region13: #{tpu_custom_call.1} parent=0 // pred_fallthru
    _
  %p14 = scmp.eq.s32.totalorder 0, 0
  // Predicated region
  $region14: #{tpu_custom_call.1} parent=0 // pred_check
    %p15 = pneg %p14
  $region15: #{tpu_custom_call.1} parent=0 // pred_check_branch
    %17 = sbr.rel (%p15) target = $region17
  $region16: #{tpu_custom_call.1} parent=0 // pred_region
    %v18 = vld [vmem:[%s2] sm:$0x1]
    %v20 = vlaneseq
    %v21 = vshrl.u32 %v20, 7
    %v22 = vsub.s32 0, %v21
    %v23 = vrot.slane %v18, %v22
    %vm25 = vcmask 261120
    %26 = vst.msk [vmem:[#allocation2] sm:$0xff] %vm25, %v23
    %27 = vst.msk [vmem:[#allocation2 + $0x8] sm:$0xff] %vm25, %v23
    %28 = vst.msk [vmem:[#allocation2 + $0x10] sm:$0xff] %vm25, %v23
    %29 = vst.msk [vmem:[#allocation2 + $0x18] sm:$0xff] %vm25, %v23
    %30 = vst.msk [vmem:[#allocation2 + $0x20] sm:$0xff] %vm25, %v23
    %31 = vst.msk [vmem:[#allocation2 + $0x28] sm:$0xff] %vm25, %v23
  $region17: #{tpu_custom_call.1} parent=0 // pred_fallthru
    _
  %v32 = vld [vmem:[#allocation2] sm:$0xff]
  %v33 = vld [vmem:[#allocation2 + $0x8] sm:$0xff]
  %v34 = vld [vmem:[#allocation2 + $0x10] sm:$0xff]
  %v35 = vld [vmem:[#allocation2 + $0x18] sm:$0xff]
  %v36 = vld [vmem:[#allocation2 + $0x20] sm:$0xff]
  %v37 = vld [vmem:[#allocation2 + $0x28] sm:$0xff]
  %v38 = vld [vmem:[%s0] sm:$0xff]
  %v39 = vld [vmem:[%s0 + $0x8] sm:$0xff]
  %v40 = vld [vmem:[%s0 + $0x10] sm:$0xff]
  %v41 = vld [vmem:[%s0 + $0x18] sm:$0xff]
  %v42 = vld [vmem:[%s0 + $0x20] sm:$0xff]
  %v43 = vld [vmem:[%s0 + $0x28] sm:$0xff]
  %v44 = vld [vmem:[%s1] sm:$0xff]
  %v45 = vld [vmem:[%s1 + $0x8] sm:$0xff]
  %v46 = vld [vmem:[%s1 + $0x10] sm:$0xff]
  %v47 = vld [vmem:[%s1 + $0x18] sm:$0xff]
  %vm48 = vcmask 261120
  %v50 = vsel %vm48, %v38, 0
  %v53 = vsel %vm48, %v39, 0
  %v56 = vsel %vm48, %v40, 0
  %v59 = vsel %vm48, %v41, 0
  %v62 = vsel %vm48, %v42, 0
  %v65 = vsel %vm48, %v43, 0
  %67 = vmatprep.subr.mxu0 0.0
  %68 = vmatpush1.msra.mxu0 0.0
  %69 = vmatprep.subr.mxu0 0.0
  %70 = vmatpush1.msra.mxu0 0.0
  %71 = vmatprep.subr.mxu0 0.0
  %72 = vmatpush1.msra.mxu0 0.0
  %73 = vmatprep.subr.mxu0 0.0
  %74 = vmatpush1.msra.mxu0 0.0
  %75 = vmatprep.subr.mxu0 0.0
  %76 = vmatpush1.msra.mxu0 0.0
  %77 = vmatprep.subr.mxu0 0.0
  %78 = vmatpush1.msra.mxu0 0.0
  %79 = vmatprep.subr.mxu0 0.0
  %80 = vmatpush1.msra.mxu0 0.0
  %81 = vmatprep.subr.mxu0 0.0
  %82 = vmatpush1.msra.mxu0 0.0
  %83 = vmatprep.subr.mxu0 0.0
  %84 = vmatpush1.msra.mxu0 0.0
  %85 = vmatprep.subr.mxu0 0.0
  %86 = vmatpush1.msra.mxu0 0.0
  %87 = vmatprep.subr.mxu0 0.0
  %88 = vmatpush1.msra.mxu0 0.0
  %89 = vmatprep.subr.mxu0 0.0
  %90 = vmatpush1.msra.mxu0 0.0
  %91 = vmatprep.subr.mxu0 0.0
  %92 = vmatpush1.msra.mxu0 %v47
  %93 = vmatprep.subr.mxu0 0.0
  %94 = vmatpush1.msra.mxu0 %v46
  %95 = vmatprep.subr.mxu0 0.0
  %96 = vmatpush1.msra.mxu0 %v45
  %97 = vmatprep.subr.mxu0 0.0
  %98 = vmatpush1.msra.mxu0 %v44
  %99 = vmatprep.subr.mxu0 0.0
  %100 = vmatpush2.msra.mxu0 0.0
  %101 = vmatprep.subr.mxu0 0.0
  %102 = vmatpush2.msra.mxu0 0.0
  %103 = vmatprep.subr.mxu0 0.0
  %104 = vmatpush2.msra.mxu0 0.0
  %105 = vmatprep.subr.mxu0 0.0
  %106 = vmatpush2.msra.mxu0 0.0
  %107 = vmatprep.subr.mxu0 0.0
  %108 = vmatpush2.msra.mxu0 0.0
  %109 = vmatprep.subr.mxu0 0.0
  %110 = vmatpush2.msra.mxu0 0.0
  %111 = vmatprep.subr.mxu0 0.0
  %112 = vmatpush2.msra.mxu0 0.0
  %113 = vmatprep.subr.mxu0 0.0
  %114 = vmatpush2.msra.mxu0 0.0
  %115 = vmatprep.subr.mxu0 0.0
  %116 = vmatpush2.msra.mxu0 0.0
  %117 = vmatprep.subr.mxu0 0.0
  %118 = vmatpush2.msra.mxu0 0.0
  %119 = vmatprep.subr.mxu0 0.0
  %120 = vmatpush2.msra.mxu0 0.0
  %121 = vmatprep.subr.mxu0 0.0
  %122 = vmatpush2.msra.mxu0 0.0
  %123 = vmatprep.subr.mxu0 0.0
  %124 = vmatpush2.msra.mxu0 0.0
  %125 = vmatprep.subr.mxu0 0.0
  %126 = vmatpush2.msra.mxu0 0.0
  %127 = vmatprep.subr.mxu0 0.0
  %128 = vmatpush2.msra.mxu0 0.0
  %129 = vmatprep.subr.mxu0 0.0
  %130 = vmatpush2.msra.mxu0 0.0
  %131 = vmatprep.mubr.f32.mxu0 0.0
  %132 = vmatmul.mubr.f32.gmra.mxu0 %v50
  %v133 = vpop.f32.mrf.mxu0
  %v134 = vadd.f32 0.0, %v133
  %v135 = vpop.f32.mrf.mxu0
  %136 = vmatprep.mubr.f32.mxu0 0.0
  %137 = vmatmul.mubr.f32.gmra.mxu0 %v53
  %v138 = vpop.f32.mrf.mxu0
  %v139 = vadd.f32 0.0, %v138
  %v140 = vpop.f32.mrf.mxu0
  %141 = vmatprep.mubr.f32.mxu0 0.0
  %142 = vmatmul.mubr.f32.gmra.mxu0 %v56
  %v143 = vpop.f32.mrf.mxu0
  %v144 = vadd.f32 0.0, %v143
  %v145 = vpop.f32.mrf.mxu0
  %146 = vmatprep.mubr.f32.mxu0 0.0
  %147 = vmatmul.mubr.f32.gmra.mxu0 %v59
  %v148 = vpop.f32.mrf.mxu0
  %v149 = vadd.f32 0.0, %v148
  %v150 = vpop.f32.mrf.mxu0
  %151 = vmatprep.mubr.f32.mxu0 0.0
  %152 = vmatmul.mubr.f32.gmra.mxu0 %v62
  %v153 = vpop.f32.mrf.mxu0
  %v154 = vadd.f32 0.0, %v153
  %v155 = vpop.f32.mrf.mxu0
  %156 = vmatprep.mubr.f32.mxu0 0.0
  %157 = vmatmul.mubr.f32.gmra.mxu0 %v65
  %v158 = vpop.f32.mrf.mxu0
  %v159 = vadd.f32 0.0, %v158
  %v160 = vpop.f32.mrf.mxu0
  %161 = vdwg.mxu0
  %v162 = vadd.f32 %v32, %v134
  %v163 = vadd.f32 %v33, %v139
  %v164 = vadd.f32 %v34, %v144
  %v165 = vadd.f32 %v35, %v149
  %v166 = vadd.f32 %v36, %v154
  %v167 = vadd.f32 %v37, %v159
  %168 = vst.msk [vmem:[#allocation2] sm:$0xff] %vm48, %v162
  %169 = vst.msk [vmem:[#allocation2 + $0x8] sm:$0xff] %vm48, %v163
  %170 = vst.msk [vmem:[#allocation2 + $0x10] sm:$0xff] %vm48, %v164
  %171 = vst.msk [vmem:[#allocation2 + $0x18] sm:$0xff] %vm48, %v165
  %172 = vst.msk [vmem:[#allocation2 + $0x20] sm:$0xff] %vm48, %v166
  %173 = vst.msk [vmem:[#allocation2 + $0x28] sm:$0xff] %vm48, %v167
  // Predicated region
  $region18: #{tpu_custom_call.1} parent=0 // pred_check
    %p174 = pneg %p14
  $region19: #{tpu_custom_call.1} parent=0 // pred_check_branch
    %176 = sbr.rel (%p174) target = $region21
  $region20: #{tpu_custom_call.1} parent=0 // pred_region
    %v177 = vld [vmem:[#allocation2] sm:$0xff]
    %v178 = vld [vmem:[#allocation2 + $0x8] sm:$0xff]
    %v179 = vld [vmem:[#allocation2 + $0x10] sm:$0xff]
    %v180 = vld [vmem:[#allocation2 + $0x18] sm:$0xff]
    %v181 = vld [vmem:[#allocation2 + $0x20] sm:$0xff]
    %v182 = vld [vmem:[#allocation2 + $0x28] sm:$0xff]
    %183 = vst.msk [vmem:[%s3] sm:$0xff] %vm48, %v177
    %184 = vst.msk [vmem:[%s3 + $0x8] sm:$0xff] %vm48, %v178
    %185 = vst.msk [vmem:[%s3 + $0x10] sm:$0xff] %vm48, %v179
    %186 = vst.msk [vmem:[%s3 + $0x18] sm:$0xff] %vm48, %v180
    %187 = vst.msk [vmem:[%s3 + $0x20] sm:$0xff] %vm48, %v181
    %188 = vst.msk [vmem:[%s3 + $0x28] sm:$0xff] %vm48, %v182
  $region21: #{tpu_custom_call.1} parent=0 // pred_fallthru
    _
  // Predicated region
  $region22: #{tpu_custom_call.1} parent=0 // pred_check
    _
  $region23: #{tpu_custom_call.1} parent=0 // pred_check_branch
    %190 = sbr.rel (0) target = $region25
  $region24: #{tpu_custom_call.1} parent=0 // pred_region
    _
  $region25: #{tpu_custom_call.1} parent=0 // pred_fallthru
    _
  // Predicated region
  $region26: #{tpu_custom_call.1} parent=0 // pred_check
    _
  $region27: #{tpu_custom_call.1} parent=0 // pred_check_branch
    %192 = sbr.rel (0) target = $region29
  $region28: #{tpu_custom_call.1} parent=0 // pred_region
    _
  $region29: #{tpu_custom_call.1} parent=0 // pred_fallthru
    _

</llo_original>
